<compile_context>
chip_gen: v7x
topology: tpu7x:2x2x1
jax: 0.10.0
libtpu: 0.0.40
codegen_flags: <defaults>
</compile_context>

<pallas_src>
import jax
import jax.numpy as jnp
from jax.experimental import pallas as pl
from jax.experimental.pallas import tpu as pltpu


def _round_up(x, m):
    return ((x + m - 1) // m) * m


def nac_fused_kernel(x_ref, w_hat_t_ref, m_hat_t_ref, o_ref):
    # Gate in f32 (no bf16 VPU/EUP on v5e); recomputed per tile — see header
    # for why this is preferred over a pl.when(program_id==0) scratch init.
    gate = jnp.tanh(w_hat_t_ref[...]) * jax.nn.sigmoid(m_hat_t_ref[...])
    # x is DMA'd as f32 (no extra wrapper cast/pad pass over x); cast on the
    # VPU right before the MXU feed.
    x_bf16 = x_ref[...].astype(jnp.bfloat16)
    o_ref[...] = jnp.dot(
        x_bf16, gate.astype(jnp.bfloat16), preferred_element_type=jnp.float32
    ).astype(o_ref.dtype)


def nac_forward(x, w_hat, m_hat, *, batch_tile=1024):
    """NAC forward: x (B, n_in), W_hat/M_hat (n_out, n_in) -> (B, n_out)."""
    batch, n_in = x.shape
    n_out = w_hat.shape[0]
    out_dtype = x.dtype

    # Only the output lane dim needs 128-padding (lane-dense stores). The
    # contraction dim K stays at its true size (block dim == full extent).
    n_pad = _round_up(n_out, 128)

    # Batch tile: multiple of 16 (bf16 sublane packing), capped by batch_tile.
    batch_tile = max(16, _round_up(batch_tile, 16))
    tb = min(batch_tile, _round_up(batch, 16))
    # Keep >=2 grid steps when the batch is big enough so the "parallel" axis
    # can be sharded across the two TensorCores on v7x (tiny batches accept a
    # single step / single core).
    if batch > 16 and _round_up(batch, tb) == tb:
        tb = _round_up((batch + 1) // 2, 16)
    b_pad = _round_up(batch, tb)

    # TODO(synk): W_hat/M_hat are parameters — this transpose+pad (and, for
    # frozen weights, the gate itself) could be precomputed once per weight
    # update instead of per forward call.
    w_hat_t = (
        jnp.zeros((n_in, n_pad), jnp.float32)
        .at[:, :n_out].set(w_hat.T.astype(jnp.float32))
    )
    m_hat_t = (
        jnp.zeros((n_in, n_pad), jnp.float32)
        .at[:, :n_out].set(m_hat.T.astype(jnp.float32))
    )

    # Pad batch rows only when needed (zero rows produce zero outputs that are
    # sliced off; tanh(0)*sigmoid(0)=0 keeps padded weight columns exact).
    x_f32 = x.astype(jnp.float32)
    if b_pad != batch:
        x_f32 = jnp.zeros((b_pad, n_in), jnp.float32).at[:batch].set(x_f32)

    grid = (b_pad // tb,)
    out = pl.pallas_call(
        nac_fused_kernel,
        out_shape=jax.ShapeDtypeStruct((b_pad, n_pad), jnp.bfloat16),
        grid=grid,
        in_specs=[
            pl.BlockSpec((tb, n_in), lambda i: (i, 0)),      # streamed x tile
            pl.BlockSpec((n_in, n_pad), lambda i: (0, 0)),   # resident W_hat^T
            pl.BlockSpec((n_in, n_pad), lambda i: (0, 0)),   # resident M_hat^T
        ],
        out_specs=pl.BlockSpec((tb, n_pad), lambda i: (i, 0)),
        compiler_params=pltpu.CompilerParams(
            dimension_semantics=("parallel",),
        ),
    )(x_f32, w_hat_t, m_hat_t)

    return out[:batch, :n_out].astype(out_dtype)


def kaiming_uniform(key, shape):
    # nn.init.kaiming_uniform_ defaults: a=0, fan_in, leaky_relu
    # -> bound = sqrt(6 / fan_in)
    fan_in = shape[1]
    bound = (6.0 / fan_in) ** 0.5
    return jax.random.uniform(key, shape, jnp.float32, -bound, bound)


if __name__ == "__main__":
    # Shapes consistent with ACModel's NAC heads: hidden=64 -> actor n_actions=7,
    # critic n_out=1; small batch of 8 observations.
    batch, hidden, n_actions = 8, 64, 7

    key = jax.random.PRNGKey(0)
    k_wa, k_ma, k_wc, k_mc, k_x = jax.random.split(key, 5)

    W_hat_actor = kaiming_uniform(k_wa, (n_actions, hidden))
    M_hat_actor = kaiming_uniform(k_ma, (n_actions, hidden))
    W_hat_critic = kaiming_uniform(k_wc, (1, hidden))
    M_hat_critic = kaiming_uniform(k_mc, (1, hidden))
    x = jax.random.normal(k_x, (batch, hidden), jnp.float32)

    # Fused heads: one pallas_call for actor (7 outputs) + critic (1 output).
    W_hat_all = jnp.concatenate([W_hat_actor, W_hat_critic], axis=0)  # (8, 64)
    M_hat_all = jnp.concatenate([M_hat_actor, M_hat_critic], axis=0)  # (8, 64)

    out = jax.block_until_ready(nac_forward(x, W_hat_all, M_hat_all))
    actor_out = out[:, :n_actions]
    critic_out = out[:, n_actions:n_actions + 1]

    # Pure-JAX f32 references.  Tolerance absorbs bf16 MXU operands + bf16
    # output store (~1e-2 relative) — documented trade-off for the ACModel
    # consumer (acceptable for RL).
    wa_ref = jnp.tanh(W_hat_actor) * jax.nn.sigmoid(M_hat_actor)
    wc_ref = jnp.tanh(W_hat_critic) * jax.nn.sigmoid(M_hat_critic)
    actor_ref = x @ wa_ref.T
    critic_ref = x @ wc_ref.T

    assert actor_out.shape == (batch, n_actions)
    assert critic_out.shape == (batch, 1)
    assert jnp.allclose(actor_out, actor_ref, atol=3e-2, rtol=3e-2)
    assert jnp.allclose(critic_out, critic_ref, atol=3e-2, rtol=3e-2)

    print("KERNEL_OK")
</pallas_src>

<mosaic_0001>
module attributes {stable_mosaic.version = 11 : i64} {
  func.func @nac_fused_kernel(%arg0: i32, %arg1: memref<16x64xf32, #tpu.memory_space<vmem>>, %arg2: memref<64x128xf32, #tpu.memory_space<vmem>>, %arg3: memref<64x128xf32, #tpu.memory_space<vmem>>, %arg4: memref<16x128xbf16, #tpu.memory_space<vmem>>) attributes {dimension_semantics = [#tpu.dimension_semantics<parallel>], iteration_bounds = array<i64: 1>, scalar_prefetch = 0 : i64, scratch_operands = 0 : i64, tpu.core_type = #tpu.core_type<tc>, window_params = [{transform_indices = @transform_0, window_bounds = array<i64: 16, 64>}, {pipeline_mode = #tpu.pipeline_mode<synchronous>, transform_indices = @transform_1, window_bounds = array<i64: 64, 128>}, {pipeline_mode = #tpu.pipeline_mode<synchronous>, transform_indices = @transform_2, window_bounds = array<i64: 64, 128>}, {transform_indices = @transform_3, window_bounds = array<i64: 16, 128>}]} {
    %c0 = arith.constant 0 : index
    %c0_0 = arith.constant 0 : index
    %0 = vector.load %arg2[%c0, %c0_0] : memref<64x128xf32, #tpu.memory_space<vmem>>, vector<64x128xf32>
    %1 = math.tanh %0 : vector<64x128xf32>
    %c0_1 = arith.constant 0 : index
    %c0_2 = arith.constant 0 : index
    %2 = vector.load %arg3[%c0_1, %c0_2] : memref<64x128xf32, #tpu.memory_space<vmem>>, vector<64x128xf32>
    %3 = arith.negf %2 : vector<64x128xf32>
    %4 = math.exp %3 : vector<64x128xf32>
    %cst = arith.constant 1.000000e+00 : f32
    %5 = vector.broadcast %cst : f32 to vector<64x128xf32>
    %6 = arith.addf %5, %4 : vector<64x128xf32>
    %7 = arith.divf %5, %6 : vector<64x128xf32>
    %8 = arith.mulf %1, %7 : vector<64x128xf32>
    %c0_3 = arith.constant 0 : index
    %c0_4 = arith.constant 0 : index
    %9 = vector.load %arg1[%c0_3, %c0_4] : memref<16x64xf32, #tpu.memory_space<vmem>>, vector<16x64xf32>
    %10 = arith.truncf %9 : vector<16x64xf32> to vector<16x64xbf16>
    %11 = arith.truncf %8 : vector<64x128xf32> to vector<64x128xbf16>
    %cst_5 = arith.constant dense<0.000000e+00> : vector<16x128xf32>
    %12 = tpu.matmul %10, %11, %cst_5 {dimension_numbers = #tpu.dot_dimension_numbers<[1], [0], [0], [1], [0, 0, 1, 1], [], []>} : vector<16x64xbf16>, vector<64x128xbf16>, vector<16x128xf32> -> vector<16x128xf32>
    %13 = arith.truncf %12 : vector<16x128xf32> to vector<16x128xbf16>
    %c0_6 = arith.constant 0 : index
    %c0_7 = arith.constant 0 : index
    %14 = vector.load %arg4[%c0_6, %c0_7] : memref<16x128xbf16, #tpu.memory_space<vmem>>, vector<16x128xbf16>
    tpu.vector_store %arg4[%c0_6, %c0_7], %13 {strides = array<i32>} : memref<16x128xbf16, #tpu.memory_space<vmem>>, vector<16x128xbf16>,
    return
  }
  func.func @transform_0(%arg0: i32) -> (i32, i32) {
    %c0_i32 = arith.constant 0 : i32
    %c0_i32_0 = arith.constant 0 : i32
    return %arg0, %c0_i32 : i32, i32
  }
  func.func @transform_1(%arg0: i32) -> (i32, i32) {
    %c0_i32 = arith.constant 0 : i32
    %c0_i32_0 = arith.constant 0 : i32
    %c0_i32_1 = arith.constant 0 : i32
    return %c0_i32, %c0_i32_0 : i32, i32
  }
  func.func @transform_2(%arg0: i32) -> (i32, i32) {
    %c0_i32 = arith.constant 0 : i32
    %c0_i32_0 = arith.constant 0 : i32
    %c0_i32_1 = arith.constant 0 : i32
    return %c0_i32, %c0_i32_0 : i32, i32
  }
  func.func @transform_3(%arg0: i32) -> (i32, i32) {
    %c0_i32 = arith.constant 0 : i32
    %c0_i32_0 = arith.constant 0 : i32
    return %arg0, %c0_i32 : i32, i32
  }
}

</mosaic_0001>

<llo_original>
// kernel: tpu_custom_call.1
$region0: #{tpu_custom_call.1}
  #allocation0 [shape = 'u32[]', space=smem, size = 0x4, offset = 0x4, fixed_abs, tag = 'smem constant byte address 0x4 - core index']
  #allocation1 [shape = 'u32[144,128]{1,0:T(1,128)}', space=vmem, size = 0x12000, scoped, tag = 'internal scratch']
  %s0 = inlined_call_operand.hbm [shape: f32[16,64], index: 0, kind: input, shape index: {}]
  %s1 = inlined_call_operand.hbm [shape: f32[64,128], index: 1, kind: input, shape index: {}]
  %s2 = inlined_call_operand.hbm [shape: f32[64,128], index: 2, kind: input, shape index: {}]
  %s3 = inlined_call_operand.hbm [shape: bf16[16,128], index: 3, kind: output, shape index: {}]
  %s4 = sld [smem:[#allocation0]]
  $region34: #{tpu_custom_call.1} parent=0
    _
  %s6 = ssub.s32 1, %s4
  %s7 = scalar_select 0, %s6, %s4
  $region1: #{tpu_custom_call.1} parent=0
    #allocation2 [shape = 'u8[8192]{0}', space=vmem, size = 0x2000, scoped, tag = 'input window, operand 0, single buffered']
    #allocation3 [shape = 's32[1]{0}', space=sflag, size = 0x4, scoped, tag = 'scoped memory for tpu_custom_call.1']
    #allocation4 [shape = 's32[1]{0}', space=sflag, size = 0x4, scoped, tag = 'scoped memory for tpu_custom_call.1']
    #allocation5 [shape = 'u8[32768]{0}', space=vmem, size = 0x8000, scoped, tag = 'input window, operand 1, single buffered']
    #allocation6 [shape = 's32[1]{0}', space=sflag, size = 0x4, scoped, tag = 'scoped memory for tpu_custom_call.1']
    #allocation7 [shape = 'u8[32768]{0}', space=vmem, size = 0x8000, scoped, tag = 'input window, operand 2, single buffered']
    #allocation8 [shape = 'u8[4096]{0}', space=vmem, size = 0x1000, scoped, tag = 'output window, operand 0, single buffered']
    %8 = vsyncpa [#allocation3], 0
    %9 = vsyncpa [#allocation6], 0
    %10 = vsyncpa [#allocation4], 0
    // Predicated region
    $region2: #{tpu_custom_call.1} parent=1 // pred_check
      _
    $region3: #{tpu_custom_call.1} parent=1 // pred_check_branch
      %12 = sbr.rel (0) target = $region5
    $region4: #{tpu_custom_call.1} parent=1 // pred_region
      %s14 = ssub.s32 256, 256
      %15 = vsyncadd [#allocation3], %s14
      %s16 = sshll.u32 [#allocation2], 4
      %s17 = int_to_ptr.vmem [resolvable:$true] %s16
      %22 = dma.hbm_to_vmem [thread:$0]  %s0, 256, %s17, [#allocation3], 128, 128, 8
    $region5: #{tpu_custom_call.1} parent=1 // pred_fallthru
      _
    // Predicated region
    $region6: #{tpu_custom_call.1} parent=1 // pred_check
      _
    $region7: #{tpu_custom_call.1} parent=1 // pred_check_branch
      %24 = sbr.rel (0) target = $region9
    $region8: #{tpu_custom_call.1} parent=1 // pred_region
      %s26 = ssub.s32 1024, 1024
      %27 = vsyncadd [#allocation6], %s26
      %s28 = sshll.u32 [#allocation5], 4
      %s29 = int_to_ptr.vmem [resolvable:$true] %s28
      %34 = dma.hbm_to_vmem [thread:$0]  %s1, 1024, %s29, [#allocation6], 128, 128, 8
    $region9: #{tpu_custom_call.1} parent=1 // pred_fallthru
      _
    // Predicated region
    $region10: #{tpu_custom_call.1} parent=1 // pred_check
      _
    $region11: #{tpu_custom_call.1} parent=1 // pred_check_branch
      %36 = sbr.rel (0) target = $region13
    $region12: #{tpu_custom_call.1} parent=1 // pred_region
      %s38 = ssub.s32 1024, 1024
      %39 = vsyncadd [#allocation6], %s38
      %s40 = sshll.u32 [#allocation7], 4
      %s41 = int_to_ptr.vmem [resolvable:$true] %s40
      %46 = dma.hbm_to_vmem [thread:$0]  %s2, 1024, %s41, [#allocation6], 128, 128, 8
    $region13: #{tpu_custom_call.1} parent=1 // pred_fallthru
      _
    // Predicated region
    $region14: #{tpu_custom_call.1} parent=1 // pred_check
      _
    $region15: #{tpu_custom_call.1} parent=1 // pred_check_branch
      %48 = sbr.rel (0) target = $region17
    $region16: #{tpu_custom_call.1} parent=1 // pred_region
      %49 = dma.done [#allocation3], 256
    $region17: #{tpu_custom_call.1} parent=1 // pred_fallthru
      _
    // Predicated region
    $region18: #{tpu_custom_call.1} parent=1 // pred_check
      _
    $region19: #{tpu_custom_call.1} parent=1 // pred_check_branch
      %51 = sbr.rel (0) target = $region21
    $region20: #{tpu_custom_call.1} parent=1 // pred_region
      %52 = dma.done [#allocation6], 1024
    $region21: #{tpu_custom_call.1} parent=1 // pred_fallthru
      _
    // Predicated region
    $region22: #{tpu_custom_call.1} parent=1 // pred_check
      _
    $region23: #{tpu_custom_call.1} parent=1 // pred_check_branch
      %54 = sbr.rel (0) target = $region25
    $region24: #{tpu_custom_call.1} parent=1 // pred_region
      %55 = dma.done [#allocation6], 1024
    $region25: #{tpu_custom_call.1} parent=1 // pred_fallthru
      _
    %v57 = vld [vmem:[#allocation5] sm:$0xff]
    %v58 = vld [vmem:[#allocation5 + $0x8] sm:$0xff]
    %v59 = vld [vmem:[#allocation5 + $0x10] sm:$0xff]
    %v60 = vld [vmem:[#allocation5 + $0x18] sm:$0xff]
    %v61 = vld [vmem:[#allocation5 + $0x20] sm:$0xff]
    %v62 = vld [vmem:[#allocation5 + $0x28] sm:$0xff]
    %v63 = vld [vmem:[#allocation5 + $0x30] sm:$0xff]
    %v64 = vld [vmem:[#allocation5 + $0x38] sm:$0xff]
    %v65 = vtanh.pop %v57
    %v66 = vtanh.pop %v58
    %v67 = vtanh.pop %v59
    %v68 = vtanh.pop %v60
    %v69 = vtanh.pop %v61
    %v70 = vtanh.pop %v62
    %v71 = vtanh.pop %v63
    %v72 = vtanh.pop %v64
    %v73 = vld [vmem:[#allocation7] sm:$0xff]
    %v74 = vld [vmem:[#allocation7 + $0x8] sm:$0xff]
    %v75 = vld [vmem:[#allocation7 + $0x10] sm:$0xff]
    %v76 = vld [vmem:[#allocation7 + $0x18] sm:$0xff]
    %v77 = vld [vmem:[#allocation7 + $0x20] sm:$0xff]
    %v78 = vld [vmem:[#allocation7 + $0x28] sm:$0xff]
    %v79 = vld [vmem:[#allocation7 + $0x30] sm:$0xff]
    %v80 = vld [vmem:[#allocation7 + $0x38] sm:$0xff]
    %v81 = vxor.u32 %v73, 2147483648
    %v82 = vxor.u32 %v74, 2147483648
    %v83 = vxor.u32 %v75, 2147483648
    %v84 = vxor.u32 %v76, 2147483648
    %v85 = vxor.u32 %v77, 2147483648
    %v86 = vxor.u32 %v78, 2147483648
    %v87 = vxor.u32 %v79, 2147483648
    %v88 = vxor.u32 %v80, 2147483648
    %v89 = vmul.f32 %v81, 1.442695
    %v90 = vpow.pop %v89
    %v91 = vmul.f32 %v82, 1.442695
    %v92 = vpow.pop %v91
    %v93 = vmul.f32 %v83, 1.442695
    %v94 = vpow.pop %v93
    %v95 = vmul.f32 %v84, 1.442695
    %v96 = vpow.pop %v95
    %v97 = vmul.f32 %v85, 1.442695
    %v98 = vpow.pop %v97
    %v99 = vmul.f32 %v86, 1.442695
    %v100 = vpow.pop %v99
    %v101 = vmul.f32 %v87, 1.442695
    %v102 = vpow.pop %v101
    %v103 = vmul.f32 %v88, 1.442695
    %v104 = vpow.pop %v103
    %v105 = vadd.f32 %v90, 1.0
    %v106 = vadd.f32 %v92, 1.0
    %v107 = vadd.f32 %v94, 1.0
    %v108 = vadd.f32 %v96, 1.0
    %v109 = vadd.f32 %v98, 1.0
    %v110 = vadd.f32 %v100, 1.0
    %v111 = vadd.f32 %v102, 1.0
    %v112 = vadd.f32 %v104, 1.0
    %v113 = vrcp.pop %v105
    %v114 = vmul.f32 1.0, %v113
    %v115 = vrcp.pop %v106
    %v116 = vmul.f32 1.0, %v115
    %v117 = vrcp.pop %v107
    %v118 = vmul.f32 1.0, %v117
    %v119 = vrcp.pop %v108
    %v120 = vmul.f32 1.0, %v119
    %v121 = vrcp.pop %v109
    %v122 = vmul.f32 1.0, %v121
    %v123 = vrcp.pop %v110
    %v124 = vmul.f32 1.0, %v123
    %v125 = vrcp.pop %v111
    %v126 = vmul.f32 1.0, %v125
    %v127 = vrcp.pop %v112
    %v128 = vmul.f32 1.0, %v127
    %v129 = vmul.f32 %v65, %v114
    %v130 = vmul.f32 %v66, %v116
    %v131 = vmul.f32 %v67, %v118
    %v132 = vmul.f32 %v68, %v120
    %v133 = vmul.f32 %v69, %v122
    %v134 = vmul.f32 %v70, %v124
    %v135 = vmul.f32 %v71, %v126
    %v136 = vmul.f32 %v72, %v128
    %v137 = vld [vmem:[#allocation2] sm:$0xff]
    %v138 = vld [vmem:[#allocation2 + $0x8] sm:$0xff]
    %v139 = vpack.c.bf16 %v138, %v137
    %v140 = vpack.c.bf16 %v130, %v129
    %v141 = vpack.c.bf16 %v132, %v131
    %v142 = vpack.c.bf16 %v134, %v133
    %v143 = vpack.c.bf16 %v136, %v135
    %vm144 = vcmask 523264
    %v146 = vsel %vm144, %v139, 0
    %148 = vmatprep.subr.bf16.mxu0 0
    %149 = vmatpush1.bf16.msra.mxu0 %v140
    %150 = vmatprep.subr.bf16.mxu0 0
    %151 = vmatpush1.bf16.msra.mxu0 %v141
    %152 = vmatprep.subr.bf16.mxu0 0
    %153 = vmatpush1.bf16.msra.mxu0 %v142
    %154 = vmatprep.subr.bf16.mxu0 0
    %155 = vmatpush1.bf16.msra.mxu0 %v143
    %156 = vmatprep.subr.bf16.mxu0 0
    %157 = vmatpush1.bf16.msra.mxu0 0
    %158 = vmatprep.subr.bf16.mxu0 0
    %159 = vmatpush1.bf16.msra.mxu0 0
    %160 = vmatprep.subr.bf16.mxu0 0
    %161 = vmatpush1.bf16.msra.mxu0 0
    %162 = vmatprep.subr.bf16.mxu0 0
    %163 = vmatpush1.bf16.msra.mxu0 0
    %164 = vmatprep.subr.bf16.mxu0 0
    %165 = vmatpush1.bf16.msra.mxu0 0
    %166 = vmatprep.subr.bf16.mxu0 0
    %167 = vmatpush1.bf16.msra.mxu0 0
    %168 = vmatprep.subr.bf16.mxu0 0
    %169 = vmatpush1.bf16.msra.mxu0 0
    %170 = vmatprep.subr.bf16.mxu0 0
    %171 = vmatpush1.bf16.msra.mxu0 0
    %172 = vmatprep.subr.bf16.mxu0 0
    %173 = vmatpush1.bf16.msra.mxu0 0
    %174 = vmatprep.subr.bf16.mxu0 0
    %175 = vmatpush1.bf16.msra.mxu0 0
    %176 = vmatprep.subr.bf16.mxu0 0
    %177 = vmatpush1.bf16.msra.mxu0 0
    %178 = vmatprep.subr.bf16.mxu0 0
    %179 = vmatpush1.bf16.msra.mxu0 0
    %180 = vmatprep.mubr.bf16.mxu0 0
    %181 = vmatmul.mubr.bf16.gmra.mrb[0].mxu0 %v146
    %v182 = vpop.f32.mrb[0].mxu0
    %v183 = vadd.f32 0.0, %v182
    %v184 = vpop.f32.mrb[0].mxu0
    %v185 = vpop.f32.mrb[0].mxu0
    %v186 = vadd.f32 0.0, %v185
    %v187 = vpop.f32.mrb[0].mxu0
    %188 = vdwg.mxu0
    %v189 = vpack.c.bf16 %v186, %v183
    %v191 = vunpack.c.l.b16 %v189
    %v192 = vunpack.c.h.b16 %v189
    %v193 = vpack.c.b16 %v191, %v191
    %v194 = vpack.c.b16 %v192, %v192
    %197 = vst [vmem:[#allocation8] sm:$0xf] %v193
    %198 = vst [vmem:[#allocation8 + $0x4] sm:$0xf] %v194
    // Predicated region
    $region26: #{tpu_custom_call.1} parent=1 // pred_check
      _
    $region27: #{tpu_custom_call.1} parent=1 // pred_check_branch
      %200 = sbr.rel (0) target = $region29
    $region28: #{tpu_custom_call.1} parent=1 // pred_region
      %s202 = ssub.s32 128, 128
      %203 = vsyncadd [#allocation4], %s202
      %s204 = sshll.u32 [#allocation8], 4
      %s205 = int_to_ptr.vmem [resolvable:$true] %s204
      %210 = dma.vmem_to_hbm [thread:$0]  %s205, 128, %s3, [#allocation4], 64, 64, 4
    $region29: #{tpu_custom_call.1} parent=1 // pred_fallthru
      _
    // Predicated region
    $region30: #{tpu_custom_call.1} parent=1 // pred_check
      _
    $region31: #{tpu_custom_call.1} parent=1 // pred_check_branch
      %212 = sbr.rel (0) target = $region33
    $region32: #{tpu_custom_call.1} parent=1 // pred_region
      %213 = dma.done [#allocation4], 128
    $region33: #{tpu_custom_call.1} parent=1 // pred_fallthru
      _
    %214 = vsyncpa [#allocation3], 1
    %215 = vsyncpa [#allocation6], 1
    %216 = vsyncpa [#allocation4], 1

</llo_original>
